<compile_context>
chip_gen: v7x
topology: tpu7x:2x2x1
jax: 0.10.0
libtpu: 0.0.40
codegen_flags: <defaults>
</compile_context>

<pallas_src>
import jax
import jax.numpy as jnp
from jax.experimental import pallas as pl
from jax.experimental.pallas import tpu as pltpu


def _round_up(x, m):
    return ((x + m - 1) // m) * m


# --------------------------- Pallas kernel bodies ---------------------------


def _fused_gather_matmul(idx_ref, feats_ref, w_ref):
    """Per-tile transposed-conv contraction with the neighbour gather done in VMEM.

    idx_ref   : (tile_n, K) int32   kernel-map tile (masked entries point at the zero row)
    feats_ref : (n_res, inc_pad) f32, VMEM-resident across the whole grid
    w_ref     : (K, inc_pad, outc_pad) bf16, VMEM-resident
    """
    tn, K = idx_ref.shape
    outc_pad = w_ref.shape[2]
    feats = feats_ref[...]                                    # stays in VMEM, loaded once
    y = jnp.zeros((tn, outc_pad), jnp.float32)
    for k in range(K):                                        # K is static (27): unrolled
        gk = jnp.take(feats, idx_ref[:, k], axis=0)           # VMEM row gather, no HBM replication
        y = y + jnp.dot(gk.astype(jnp.bfloat16), w_ref[k],
                        preferred_element_type=jnp.float32)
    return y


def _fused_stats_kernel(idx_ref, feats_ref, w_ref, sum_ref, ssq_ref):
    # pass 1: matmul + per-tile BN partial sums (the f32 y never touches HBM)
    y = _fused_gather_matmul(idx_ref, feats_ref, w_ref)
    # NOTE: if a profile shows VALU/XLU binding here, the column sum can be moved onto the MXU
    #       (ones(1, tn) @ y); kept as a vector reduce for clarity.
    sum_ref[...] = jnp.sum(y, axis=0).reshape(1, 1, -1)
    ssq_ref[...] = jnp.sum(y * y, axis=0).reshape(1, 1, -1)


def _fused_bnrelu_kernel(idx_ref, feats_ref, w_ref, scale_ref, shift_ref, o_ref):
    # pass 2: recompute matmul (MXU has headroom), fold BN scale/shift, ReLU, single writeback
    y = _fused_gather_matmul(idx_ref, feats_ref, w_ref)
    o_ref[...] = jnp.maximum(y * scale_ref[...] + shift_ref[...], 0.0).astype(o_ref.dtype)


# Fallback path (pre-gathered K-replicated activations in HBM, bf16-packed) — used only if the
# in-kernel gather does not lower on the installed Pallas version.

def _pre_stats_kernel(x_ref, w_ref, sum_ref, ssq_ref):
    y = jnp.dot(x_ref[...], w_ref[...], preferred_element_type=jnp.float32)
    sum_ref[...] = jnp.sum(y, axis=0).reshape(1, 1, -1)
    ssq_ref[...] = jnp.sum(y * y, axis=0).reshape(1, 1, -1)


def _pre_bnrelu_kernel(x_ref, w_ref, scale_ref, shift_ref, o_ref):
    y = jnp.dot(x_ref[...], w_ref[...], preferred_element_type=jnp.float32)
    o_ref[...] = jnp.maximum(y * scale_ref[...] + shift_ref[...], 0.0).astype(o_ref.dtype)


# --------------------------------- wrapper ----------------------------------


def sparse_deconv_bn_relu(feats, idx, mask, weight, gamma, beta, *,
                          tile_n=512, eps=1e-5, fuse_gather=True,
                          out_dtype=jnp.float32,
                          vmem_limit_bytes=48 * 1024 * 1024):
    """Sparse transposed conv (stride=1) + BatchNorm (training stats) + ReLU.

    feats  [N, inc] f32, idx/mask [N, K] kernel map, weight [K, inc, outc], gamma/beta [outc].
    """
    N, inc = feats.shape
    K = idx.shape[1]
    outc = weight.shape[-1]

    # ---- tiling: lane-dense, (8,128)-aligned, >= 2 grid steps for v7x's 2 TensorCores ----
    tile_n = max(8, _round_up(tile_n, 8))
    tile_n = min(tile_n, max(8, _round_up(N, 8)))            # do not tile past the data
    if N > 16:
        tile_n = min(tile_n, max(8, _round_up(-(-N // 2), 8)))
    n_pad = _round_up(N, tile_n)
    grid_n = n_pad // tile_n
    outc_pad = _round_up(outc, 128)

    cp = pltpu.CompilerParams(
        dimension_semantics=("parallel",),       # shard tiles across TensorCores (v7x)
        vmem_limit_bytes=vmem_limit_bytes,       # 48 MiB default (v7x-safe); 64-96 MiB on v5e/v6e
    )

    gamma32 = jnp.zeros((outc_pad,), jnp.float32).at[:outc].set(gamma.astype(jnp.float32))
    beta32 = jnp.zeros((outc_pad,), jnp.float32).at[:outc].set(beta.astype(jnp.float32))

    if fuse_gather:
        # ---- in-kernel gather: HBM holds only feats [N, inc_pad] + int32 kernel map ----
        # TODO(synk): for point clouds where feats does not fit VMEM, stream sorted windows.
        inc_pad = _round_up(inc, 128)
        n_res = _round_up(N + 1, 8)                           # +1: shared all-zero row
        feats_res = jnp.zeros((n_res, inc_pad), jnp.float32).at[:N, :inc].set(
            feats.astype(jnp.float32))
        idx_z = jnp.where(mask, idx.astype(jnp.int32), N)     # masked neighbour -> zero row
        idx_full = jnp.full((n_pad, K), N, jnp.int32).at[:N, :].set(idx_z.astype(jnp.int32))
        w3 = jnp.zeros((K, inc_pad, outc_pad), jnp.bfloat16).at[:, :inc, :outc].set(
            weight.astype(jnp.bfloat16))

        act_args = (idx_full, feats_res, w3)
        act_specs = [
            pl.BlockSpec((tile_n, K), lambda i: (i, 0)),                  # kernel-map tile
            pl.BlockSpec((n_res, inc_pad), lambda i: (0, 0)),             # feats: VMEM-resident
            pl.BlockSpec((K, inc_pad, outc_pad), lambda i: (0, 0, 0)),    # weight: VMEM-resident
        ]
        stats_kernel, bnrelu_kernel = _fused_stats_kernel, _fused_bnrelu_kernel
    else:
        # ---- fallback: K-replicated gather materialised in HBM by XLA (bf16-packed) ----
        kc = K * inc
        kc_pad = _round_up(kc, 128)
        gathered = jnp.where(mask[..., None], feats[idx], 0.0)            # [N, K, inc]
        x = jnp.zeros((n_pad, kc_pad), jnp.bfloat16).at[:N, :kc].set(
            gathered.reshape(N, kc).astype(jnp.bfloat16))
        w2 = jnp.zeros((kc_pad, outc_pad), jnp.bfloat16).at[:kc, :outc].set(
            weight.reshape(kc, outc).astype(jnp.bfloat16))

        act_args = (x, w2)
        act_specs = [
            pl.BlockSpec((tile_n, kc_pad), lambda i: (i, 0)),
            pl.BlockSpec((kc_pad, outc_pad), lambda i: (0, 0)),           # weight: VMEM-resident
        ]
        stats_kernel, bnrelu_kernel = _pre_stats_kernel, _pre_bnrelu_kernel

    # --- pass 1: transposed-conv matmul + fused per-tile BN statistics (no y in HBM) ---
    psum, pssq = pl.pallas_call(
        stats_kernel,
        out_shape=(
            jax.ShapeDtypeStruct((grid_n, 1, outc_pad), jnp.float32),
            jax.ShapeDtypeStruct((grid_n, 1, outc_pad), jnp.float32),
        ),
        grid_spec=pltpu.PrefetchScalarGridSpec(
            num_scalar_prefetch=0,
            grid=(grid_n,),
            in_specs=act_specs,
            out_specs=(
                pl.BlockSpec((1, 1, outc_pad), lambda i: (i, 0, 0)),
                pl.BlockSpec((1, 1, outc_pad), lambda i: (i, 0, 0)),
            ),
        ),
        compiler_params=cp,
    )(*act_args)

    # --- finalize BN stats on tiny [grid_n, outc_pad] partials (single-pass var, clamped) ---
    n = jnp.float32(N)                                        # padded rows contribute exact zeros
    mean = jnp.sum(psum, axis=(0, 1)) / n
    var = jnp.maximum(jnp.sum(pssq, axis=(0, 1)) / n - mean * mean, 0.0)
    rstd = jax.lax.rsqrt(var + eps)
    scale = (gamma32 * rstd).reshape(1, outc_pad)
    shift = (beta32 - mean * gamma32 * rstd).reshape(1, outc_pad)

    # --- pass 2: recompute matmul, fused normalize + ReLU, single HBM writeback ---
    out = pl.pallas_call(
        bnrelu_kernel,
        out_shape=jax.ShapeDtypeStruct((n_pad, outc_pad), out_dtype),
        grid_spec=pltpu.PrefetchScalarGridSpec(
            num_scalar_prefetch=0,
            grid=(grid_n,),
            in_specs=act_specs + [
                pl.BlockSpec((1, outc_pad), lambda i: (0, 0)),
                pl.BlockSpec((1, outc_pad), lambda i: (0, 0)),
            ],
            out_specs=pl.BlockSpec((tile_n, outc_pad), lambda i: (i, 0)),
        ),
        compiler_params=cp,
    )(*act_args, scale, shift)

    return out[:N, :outc]


# ------------------- sparse glue: transposed-conv kernel map ----------------


def build_kernel_map(coords, ks=3, D=3):
    """Sort + searchsorted neighbour lookup, O(N*K*logN).

    Returns idx [N, K] int32 (input row feeding output row i through offset k) and mask [N, K].
    Assumes unique voxel coordinates and a single batch (no batch column).
    """
    N = coords.shape[0]
    half = ks // 2
    rng = jnp.arange(-half, half + 1)
    offs = jnp.stack(jnp.meshgrid(*([rng] * D), indexing="ij"), axis=-1).reshape(-1, D)  # [K,D]

    shifted = coords - coords.min(axis=0, keepdims=True) + half        # all targets stay >= 0
    dims = shifted.max(axis=0) + half + 1

    def encode(c):
        return (c[..., 0] * dims[1] + c[..., 1]) * dims[2] + c[..., 2]

    keys = encode(shifted)                                             # [N]
    # transposed-conv kernel map: output at u takes W_k applied to the input at u - offset_k
    tgt_keys = encode(shifted[:, None, :] - offs[None, :, :])          # [N, K]

    order = jnp.argsort(keys)
    sorted_keys = keys[order]
    pos = jnp.clip(jnp.searchsorted(sorted_keys, tgt_keys), 0, N - 1)
    mask = sorted_keys[pos] == tgt_keys
    idx = jnp.where(mask, order[pos], 0).astype(jnp.int32)
    return idx, mask


# ----------------------------------- demo -----------------------------------


if __name__ == "__main__":
    key = jax.random.PRNGKey(0)
    k_coord, k_feat, k_w = jax.random.split(key, 3)

    # BasicDeconvolutionBlock defaults: ks=3, stride=1, D=3
    inc, outc, ks, D = 4, 8, 3, 3
    K = ks ** D                                     # 27

    # small sparse point cloud: N unique voxel coordinates sampled from a 12^3 grid
    N, grid = 1024, 12
    all_coords = jnp.stack(
        jnp.meshgrid(jnp.arange(grid), jnp.arange(grid), jnp.arange(grid), indexing="ij"),
        axis=-1).reshape(-1, 3)
    perm = jax.random.permutation(k_coord, all_coords.shape[0])
    coords = all_coords[perm[:N]].astype(jnp.int32)                 # [N, 3]
    feats = jax.random.normal(k_feat, (N, inc), jnp.float32)        # [N, inc]
    weight = 0.1 * jax.random.normal(k_w, (K, inc, outc), jnp.float32)  # ME weight, bias=False
    gamma = jnp.ones((outc,), jnp.float32)                          # BN affine defaults
    beta = jnp.zeros((outc,), jnp.float32)

    idx, mask = build_kernel_map(coords, ks=ks, D=D)

    # pure-JAX reference (same bf16 operand rounding, f32 accumulation)
    gathered = jnp.where(mask[..., None], feats[idx], 0.0)
    xb = gathered.reshape(N, K * inc).astype(jnp.bfloat16).astype(jnp.float32)
    wb = weight.reshape(K * inc, outc).astype(jnp.bfloat16).astype(jnp.float32)
    y_ref = jnp.dot(xb, wb, precision=jax.lax.Precision.HIGHEST)
    m_ref = y_ref.mean(0, keepdims=True)
    v_ref = ((y_ref - m_ref) ** 2).mean(0, keepdims=True)
    ref = jnp.maximum((y_ref - m_ref) * jax.lax.rsqrt(v_ref + 1e-5) * gamma + beta, 0.0)

    def run(fuse):
        out = sparse_deconv_bn_relu(feats, idx, mask, weight, gamma, beta,
                                    tile_n=256, fuse_gather=fuse)
        out = jax.block_until_ready(out)
        assert out.shape == (N, outc)
        assert jnp.allclose(out.astype(jnp.float32), ref, atol=2e-3, rtol=2e-3), \
            "mismatch vs reference"
        return out

    try:
        run(True)            # fused in-kernel gather: no K-replicated tensor in HBM
    except Exception:        # older Pallas without an in-kernel row-gather lowering
        run(False)           # pre-gathered fallback path (still no f32 y round-trip)

    print("KERNEL_OK")
</pallas_src>

<mosaic_0001>
module attributes {stable_mosaic.version = 11 : i64} {
  func.func @_pre_stats_kernel(%arg0: i32, %arg1: memref<256x128xbf16, #tpu.memory_space<vmem>>, %arg2: memref<128x128xbf16, #tpu.memory_space<vmem>>, %arg3: memref<1x1x128xf32, #tpu.memory_space<vmem>>, %arg4: memref<1x1x128xf32, #tpu.memory_space<vmem>>) attributes {dimension_semantics = [#tpu.dimension_semantics<parallel>], iteration_bounds = array<i64: 4>, scalar_prefetch = 0 : i64, scratch_operands = 0 : i64, tpu.core_type = #tpu.core_type<tc>, window_params = [{transform_indices = @transform_0, window_bounds = array<i64: 256, 128>}, {pipeline_mode = #tpu.pipeline_mode<synchronous>, transform_indices = @transform_1, window_bounds = array<i64: 128, 128>}, {transform_indices = @transform_2, window_bounds = array<i64: 1, 1, 128>}, {transform_indices = @transform_3, window_bounds = array<i64: 1, 1, 128>}]} {
    %c0 = arith.constant 0 : index
    %c0_0 = arith.constant 0 : index
    %0 = vector.load %arg1[%c0, %c0_0] : memref<256x128xbf16, #tpu.memory_space<vmem>>, vector<256x128xbf16>
    %c0_1 = arith.constant 0 : index
    %c0_2 = arith.constant 0 : index
    %1 = vector.load %arg2[%c0_1, %c0_2] : memref<128x128xbf16, #tpu.memory_space<vmem>>, vector<128x128xbf16>
    %cst = arith.constant dense<0.000000e+00> : vector<256x128xf32>
    %2 = tpu.matmul %0, %1, %cst {dimension_numbers = #tpu.dot_dimension_numbers<[1], [0], [0], [1], [0, 0, 1, 1], [], []>} : vector<256x128xbf16>, vector<128x128xbf16>, vector<256x128xf32> -> vector<256x128xf32>
    %cst_3 = arith.constant dense<0.000000e+00> : vector<128xf32>
    %3 = vector.multi_reduction <add>, %2, %cst_3 [0] : vector<256x128xf32> to vector<128xf32>
    %4 = vector.shape_cast %3 : vector<128xf32> to vector<1x1x128xf32>
    %c0_4 = arith.constant 0 : index
    %c0_5 = arith.constant 0 : index
    %c0_6 = arith.constant 0 : index
    %5 = vector.load %arg3[%c0_4, %c0_5, %c0_6] : memref<1x1x128xf32, #tpu.memory_space<vmem>>, vector<1x1x128xf32>
    tpu.vector_store %arg3[%c0_4, %c0_5, %c0_6], %4 {strides = array<i32>} : memref<1x1x128xf32, #tpu.memory_space<vmem>>, vector<1x1x128xf32>,
    %6 = arith.mulf %2, %2 : vector<256x128xf32>
    %cst_7 = arith.constant dense<0.000000e+00> : vector<128xf32>
    %7 = vector.multi_reduction <add>, %6, %cst_7 [0] : vector<256x128xf32> to vector<128xf32>
    %8 = vector.shape_cast %7 : vector<128xf32> to vector<1x1x128xf32>
    %c0_8 = arith.constant 0 : index
    %c0_9 = arith.constant 0 : index
    %c0_10 = arith.constant 0 : index
    %9 = vector.load %arg4[%c0_8, %c0_9, %c0_10] : memref<1x1x128xf32, #tpu.memory_space<vmem>>, vector<1x1x128xf32>
    tpu.vector_store %arg4[%c0_8, %c0_9, %c0_10], %8 {strides = array<i32>} : memref<1x1x128xf32, #tpu.memory_space<vmem>>, vector<1x1x128xf32>,
    return
  }
  func.func @transform_0(%arg0: i32) -> (i32, i32) {
    %c0_i32 = arith.constant 0 : i32
    %c0_i32_0 = arith.constant 0 : i32
    return %arg0, %c0_i32 : i32, i32
  }
  func.func @transform_1(%arg0: i32) -> (i32, i32) {
    %c0_i32 = arith.constant 0 : i32
    %c0_i32_0 = arith.constant 0 : i32
    %c0_i32_1 = arith.constant 0 : i32
    return %c0_i32, %c0_i32_0 : i32, i32
  }
  func.func @transform_2(%arg0: i32) -> (i32, i32, i32) {
    %c0_i32 = arith.constant 0 : i32
    %c0_i32_0 = arith.constant 0 : i32
    %c0_i32_1 = arith.constant 0 : i32
    return %arg0, %c0_i32, %c0_i32_0 : i32, i32, i32
  }
  func.func @transform_3(%arg0: i32) -> (i32, i32, i32) {
    %c0_i32 = arith.constant 0 : i32
    %c0_i32_0 = arith.constant 0 : i32
    %c0_i32_1 = arith.constant 0 : i32
    return %arg0, %c0_i32, %c0_i32_0 : i32, i32, i32
  }
}

</mosaic_0001>

<llo_original>
// kernel: tpu_custom_call.1
$region0: #{tpu_custom_call.1}
  #allocation0 [shape = 'u32[]', space=smem, size = 0x4, offset = 0x4, fixed_abs, tag = 'smem constant byte address 0x4 - core index']
  #allocation1 [shape = 'u32[144,128]{1,0:T(1,128)}', space=vmem, size = 0x12000, scoped, tag = 'internal scratch']
  %s0 = inlined_call_operand.hbm [shape: bf16[1024,128], index: 0, kind: input, shape index: {}]
  %s1 = inlined_call_operand.hbm [shape: bf16[128,128], index: 1, kind: input, shape index: {}]
  %s2 = inlined_call_operand.hbm [shape: f32[4,1,128], index: 2, kind: output, shape index: {0}]
  %s3 = inlined_call_operand.hbm [shape: f32[4,1,128], index: 3, kind: output, shape index: {1}]
  %4 = xla_tuple %s2, %s3
  %s5 = sld [smem:[#allocation0]]
  $region57: #{tpu_custom_call.1} parent=0
    _
  %s7 = ssub.s32 1, %s5
  %s8 = scalar_select 0, %s7, %s5
  $region1: #{tpu_custom_call.1} parent=0
    #allocation2 [shape = 'u8[131072]{0}', space=vmem, size = 0x20000, scoped, tag = 'input window, operand 0']
    #allocation3 [shape = 's32[2]{0}', space=sflag, size = 0x8, scoped, tag = 'scoped memory for tpu_custom_call.1']
    #allocation4 [shape = 's32[2]{0}', space=sflag, size = 0x8, scoped, tag = 'scoped memory for tpu_custom_call.1']
    #allocation5 [shape = 'u8[32768]{0}', space=vmem, size = 0x8000, scoped, tag = 'input window, operand 1, single buffered']
    #allocation6 [shape = 's32[1]{0}', space=sflag, size = 0x4, scoped, tag = 'scoped memory for tpu_custom_call.1']
    #allocation7 [shape = 'u8[1024]{0}', space=vmem, size = 0x400, scoped, tag = 'output window, operand 0']
    #allocation8 [shape = 'u8[1024]{0}', space=vmem, size = 0x400, scoped, tag = 'output window, operand 1']
    #allocation9 [shape = 's32[2]{0}', space=sflag, size = 0x8, scoped, tag = 'scoped memory for tpu_custom_call.1']
    %9 = vsyncpa [#allocation3], 0
    %s10 = scalar_lea.sflag [#allocation3], 1
    %11 = vsyncpa %s10, 0
    %12 = vsyncpa [#allocation6], 0
    %13 = vsyncpa [#allocation4], 0
    %s14 = scalar_lea.sflag [#allocation4], 1
    %15 = vsyncpa %s14, 0
    %16 = vsyncpa [#allocation9], 0
    %s17 = scalar_lea.sflag [#allocation9], 1
    %18 = vsyncpa %s17, 0
    loop: start=0, step=1, limit=6
    $region2: #{tpu_custom_call.1} parent=1 // loop_pre_header
      _
    $region3: #{tpu_custom_call.1} parent=1 // loop_header
      %s20 = sphi 0, %s24
      %p21 = scmp.ge.s32.totalorder %s20, 6
      %s30 = sphi 0, %s32
      %s33 = sphi 0, %s30
      %s34 = sphi 0, %s33
      %s50 = sphi 0, %s34
      %s54 = sphi 0, %s54
      %s56 = sphi 0, %s54
      %s57 = sphi 0, %s56
      %s71 = sphi 0, %s57
      %s77 = sphi 0, %s79
      %s80 = sphi 0, %s77
      %s81 = sphi 0, %s80
      %s97 = sphi 0, %s81
      %s103 = sphi 0, %s105
      %s106 = sphi 0, %s103
      %s107 = sphi 0, %s106
      %s123 = sphi 0, %s107
    $region4: #{tpu_custom_call.1} parent=1 // loop_header_branch
      %23 = sbr.rel (%p21) target = $region8
    $region5: #{tpu_custom_call.1} parent=1 // loop_body
      %s25 = ssub.s32 %s20, 1
      %s26 = ssub.s32 %s20, 2
      %s27 = sadd.s32 %s20, 1
      %s28 = ssub.s32 %s20, %s27
      %p29 = scmp.eq.s32.totalorder %s28, 0
      %s31 = sadd.s32 %s30, 1
      %s32 = scalar_select %p29, %s30, %s31
      %p35 = pneg %p29
      %p36 = scmp.eq.s32.totalorder %s20, 3
      %p37 = por %p35, %p36
      %p38 = scmp.ne.s32.totalorder %s30, %s33
      %p39 = scmp.eq.s32.totalorder %s20, 0
      %p40 = por %p38, %p39
      %p41 = scmp.ne.s32.totalorder %s30, %s33
      %p42 = scmp.eq.s32.totalorder %s25, 3
      %p43 = por %p41, %p42
      %p44 = scmp.ne.s32.totalorder %s33, %s34
      %p45 = scmp.eq.s32.totalorder %s25, 0
      %p46 = por %p44, %p45
      %p47 = scmp.ne.s32.totalorder %s33, %s34
      %p48 = scmp.eq.s32.totalorder %s26, 3
      %p49 = por %p47, %p48
      %p51 = scmp.ne.s32.totalorder %s34, %s50
      %p52 = scmp.eq.s32.totalorder %s26, 0
      %p53 = por %p51, %p52
      %s55 = sadd.s32 %s54, 1
      %p58 = scmp.eq.s32.totalorder %s20, 3
      %p59 = scmp.ne.s32.totalorder %s54, %s56
      %p60 = scmp.eq.s32.totalorder %s20, 0
      %p61 = por %p59, %p60
      %p62 = scmp.ne.s32.totalorder %s54, %s56
      %p63 = scmp.eq.s32.totalorder %s25, 3
      %p64 = por %p62, %p63
      %p65 = scmp.ne.s32.totalorder %s56, %s57
      %p66 = scmp.eq.s32.totalorder %s25, 0
      %p67 = por %p65, %p66
      %p68 = scmp.ne.s32.totalorder %s56, %s57
      %p69 = scmp.eq.s32.totalorder %s26, 3
      %p70 = por %p68, %p69
      %p72 = scmp.ne.s32.totalorder %s57, %s71
      %p73 = scmp.eq.s32.totalorder %s26, 0
      %p74 = por %p72, %p73
      %s75 = ssub.s32 %s20, %s27
      %p76 = scmp.eq.s32.totalorder %s75, 0
      %s78 = sadd.s32 %s77, 1
      %s79 = scalar_select %p76, %s77, %s78
      %p82 = pneg %p76
      %p83 = scmp.eq.s32.totalorder %s20, 3
      %p84 = por %p82, %p83
      %p85 = scmp.ne.s32.totalorder %s77, %s80
      %p86 = scmp.eq.s32.totalorder %s20, 0
      %p87 = por %p85, %p86
      %p88 = scmp.ne.s32.totalorder %s77, %s80
      %p89 = scmp.eq.s32.totalorder %s25, 3
      %p90 = por %p88, %p89
      %p91 = scmp.ne.s32.totalorder %s80, %s81
      %p92 = scmp.eq.s32.totalorder %s25, 0
      %p93 = por %p91, %p92
      %p94 = scmp.ne.s32.totalorder %s80, %s81
      %p95 = scmp.eq.s32.totalorder %s26, 3
      %p96 = por %p94, %p95
      %p98 = scmp.ne.s32.totalorder %s81, %s97
      %p99 = scmp.eq.s32.totalorder %s26, 0
      %p100 = por %p98, %p99
      %s101 = ssub.s32 %s20, %s27
      %p102 = scmp.eq.s32.totalorder %s101, 0
      %s104 = sadd.s32 %s103, 1
      %s105 = scalar_select %p102, %s103, %s104
      %p108 = pneg %p102
      %p109 = scmp.eq.s32.totalorder %s20, 3
      %p110 = por %p108, %p109
      %p111 = scmp.ne.s32.totalorder %s103, %s106
      %p112 = scmp.eq.s32.totalorder %s20, 0
      %p113 = por %p111, %p112
      %p114 = scmp.ne.s32.totalorder %s103, %s106
      %p115 = scmp.eq.s32.totalorder %s25, 3
      %p116 = por %p114, %p115
      %p117 = scmp.ne.s32.totalorder %s106, %s107
      %p118 = scmp.eq.s32.totalorder %s25, 0
      %p119 = por %p117, %p118
      %p120 = scmp.ne.s32.totalorder %s106, %s107
      %p121 = scmp.eq.s32.totalorder %s26, 3
      %p122 = por %p120, %p121
      %p124 = scmp.ne.s32.totalorder %s107, %s123
      %p125 = scmp.eq.s32.totalorder %s26, 0
      %p126 = por %p124, %p125
      %p127 = scmp.le.s32.totalorder 1, %s20
      %p128 = scmp.lt.s32.totalorder %s20, 5
      %p129 = pnand %p127, %p128
      %p130 = pneg %p129
      // Predicated region
      $region9: #{tpu_custom_call.1} parent=5 // pred_check
        _
      $region10: #{tpu_custom_call.1} parent=5 // pred_check_branch
        %132 = sbr.rel (%p129) target = $region12
      $region11: #{tpu_custom_call.1} parent=5 // pred_region
        %s133 = ssub.s32 %s20, 1
        // Predicated region
        $region13: #{tpu_custom_call.1} parent=11 // pred_check
          %p134 = pneg %p67
        $region14: #{tpu_custom_call.1} parent=11 // pred_check_branch
          %136 = sbr.rel (%p134) target = $region16
        $region15: #{tpu_custom_call.1} parent=11 // pred_region
          %s138 = ssub.s32 1024, 1024
          %139 = vsyncadd [#allocation6], %s138
          %s140 = sshll.u32 [#allocation5], 4
          %s141 = int_to_ptr.vmem [resolvable:$true] %s140
          %146 = dma.hbm_to_vmem [thread:$0]  %s1, 1024, %s141, [#allocation6], 64, 64, 4
        $region16: #{tpu_custom_call.1} parent=11 // pred_fallthru
          _
      $region12: #{tpu_custom_call.1} parent=5 // pred_fallthru
        _
      %p147 = scmp.lt.s32.totalorder %s20, 4
      // Predicated region
      $region17: #{tpu_custom_call.1} parent=5 // pred_check
        %p148 = pneg %p147
      $region18: #{tpu_custom_call.1} parent=5 // pred_check_branch
        %150 = sbr.rel (%p148) target = $region20
      $region19: #{tpu_custom_call.1} parent=5 // pred_region
        // Predicated region
        $region21: #{tpu_custom_call.1} parent=19 // pred_check
          %p151 = pneg %p40
        $region22: #{tpu_custom_call.1} parent=19 // pred_check_branch
          %153 = sbr.rel (%p151) target = $region24
        $region23: #{tpu_custom_call.1} parent=19 // pred_region
          %s154 = sand.u32 %s30, 1
          %s155 = scalar_lea.sflag [#allocation3], %s154
          %s156 = sand.u32 %s30, 1
          %s157 = smul.addr %s156, 128
          %s158 = scalar_lea.vmem [#allocation2], %s157
          %s159 = smul.u32 32, %s20
          %s161 = ssub.s32 2048, 2048
          %162 = vsyncadd %s155, %s161
          %s163 = smul.addr %s159, 64
          %s164 = scalar_lea.hbm %s0, %s163
          %s165 = sshll.u32 %s158, 4
          %s166 = int_to_ptr.vmem [resolvable:$true] %s165
          %171 = dma.hbm_to_vmem [thread:$0]  %s164, 2048, %s166, %s155, 64, 64, 4
        $region24: #{tpu_custom_call.1} parent=19 // pred_fallthru
          _
      $region20: #{tpu_custom_call.1} parent=5 // pred_fallthru
        _
      %p172 = scmp.le.s32.totalorder 1, %s20
      %p173 = scmp.lt.s32.totalorder %s20, 5
      %p174 = pnand %p172, %p173
      %p175 = pneg %p174
      // Predicated region
      $region25: #{tpu_custom_call.1} parent=5 // pred_check
        _
      $region26: #{tpu_custom_call.1} parent=5 // pred_check_branch
        %177 = sbr.rel (%p174) target = $region28
      $region27: #{tpu_custom_call.1} parent=5 // pred_region
        %s178 = ssub.s32 %s20, 1
        %s179 = sand.u32 %s33, 1
        %s180 = scalar_lea.sflag [#allocation3], %s179
        %s181 = sand.u32 %s33, 1
        %s182 = smul.addr %s181, 128
        %s183 = scalar_lea.vmem [#allocation2], %s182
        // Predicated region
        $region29: #{tpu_custom_call.1} parent=27 // pred_check
          %p184 = pneg %p46
        $region30: #{tpu_custom_call.1} parent=27 // pred_check_branch
          %186 = sbr.rel (%p184) target = $region32
        $region31: #{tpu_custom_call.1} parent=27 // pred_region
          %187 = dma.done %s180, 2048
        $region32: #{tpu_custom_call.1} parent=27 // pred_fallthru
          _
        // Predicated region
        $region33: #{tpu_custom_call.1} parent=27 // pred_check
          %p188 = pneg %p67
        $region34: #{tpu_custom_call.1} parent=27 // pred_check_branch
          %190 = sbr.rel (%p188) target = $region36
        $region35: #{tpu_custom_call.1} parent=27 // pred_region
          %191 = dma.done [#allocation6], 1024
        $region36: #{tpu_custom_call.1} parent=27 // pred_fallthru
          _
        %s192 = sand.u32 %s33, 1
        %s193 = scalar_lea.sflag [#allocation3], %s192
        %s194 = sand.u32 %s33, 1
        %s195 = smul.addr %s194, 128
        %s196 = scalar_lea.vmem [#allocation2], %s195
        %p197 = pneg %p46
        %p198 = pneg %p43
        %p199 = pneg %p67
        %p200 = pneg %p64
        %p201 = pneg %p93
        %p202 = pneg %p90
        %s203 = sand.u32 %s80, 1
        %s204 = scalar_lea.sflag [#allocation4], %s203
        %s205 = sand.u32 %s80, 1
        %s206 = scalar_lea.vmem [#allocation7], %s205
        %p207 = pneg %p119
        %p208 = pneg %p116
        %s209 = sand.u32 %s106, 1
        %s210 = scalar_lea.sflag [#allocation9], %s209
        %s211 = sand.u32 %s106, 1
        %s212 = scalar_lea.vmem [#allocation8], %s211
        %s213 = smul.u32 32, %s25
        %v215 = vld [vmem:[%s183] sm:$0xf]
        %v216 = vld [vmem:[%s183 + $0x4] sm:$0xf]
        %v217 = vld [vmem:[%s183 + $0x8] sm:$0xf]
        %v218 = vld [vmem:[%s183 + $0xc] sm:$0xf]
        %v219 = vld [vmem:[%s183 + $0x10] sm:$0xf]
        %v220 = vld [vmem:[%s183 + $0x14] sm:$0xf]
        %v221 = vld [vmem:[%s183 + $0x18] sm:$0xf]
        %v222 = vld [vmem:[%s183 + $0x1c] sm:$0xf]
        %v223 = vld [vmem:[%s183 + $0x20] sm:$0xf]
        %v224 = vld [vmem:[%s183 + $0x24] sm:$0xf]
        %v225 = vld [vmem:[%s183 + $0x28] sm:$0xf]
        %v226 = vld [vmem:[%s183 + $0x2c] sm:$0xf]
        %v227 = vld [vmem:[%s183 + $0x30] sm:$0xf]
        %v228 = vld [vmem:[%s183 + $0x34] sm:$0xf]
        %v229 = vld [vmem:[%s183 + $0x38] sm:$0xf]
        %v230 = vld [vmem:[%s183 + $0x3c] sm:$0xf]
        %v231 = vld [vmem:[%s183 + $0x40] sm:$0xf]
        %v232 = vld [vmem:[%s183 + $0x44] sm:$0xf]
        %v233 = vld [vmem:[%s183 + $0x48] sm:$0xf]
        %v234 = vld [vmem:[%s183 + $0x4c] sm:$0xf]
        %v235 = vld [vmem:[%s183 + $0x50] sm:$0xf]
        %v236 = vld [vmem:[%s183 + $0x54] sm:$0xf]
        %v237 = vld [vmem:[%s183 + $0x58] sm:$0xf]
        %v238 = vld [vmem:[%s183 + $0x5c] sm:$0xf]
        %v239 = vld [vmem:[%s183 + $0x60] sm:$0xf]
        %v240 = vld [vmem:[%s183 + $0x64] sm:$0xf]
        %v241 = vld [vmem:[%s183 + $0x68] sm:$0xf]
        %v242 = vld [vmem:[%s183 + $0x6c] sm:$0xf]
        %v243 = vld [vmem:[%s183 + $0x70] sm:$0xf]
        %v244 = vld [vmem:[%s183 + $0x74] sm:$0xf]
        %v245 = vld [vmem:[%s183 + $0x78] sm:$0xf]
        %v246 = vld [vmem:[%s183 + $0x7c] sm:$0xf]
        %v247 = vld [vmem:[#allocation5] sm:$0xf]
        %v248 = vld [vmem:[#allocation5 + $0x4] sm:$0xf]
        %v249 = vld [vmem:[#allocation5 + $0x8] sm:$0xf]
        %v250 = vld [vmem:[#allocation5 + $0xc] sm:$0xf]
        %v251 = vld [vmem:[#allocation5 + $0x10] sm:$0xf]
        %v252 = vld [vmem:[#allocation5 + $0x14] sm:$0xf]
        %v253 = vld [vmem:[#allocation5 + $0x18] sm:$0xf]
        %v254 = vld [vmem:[#allocation5 + $0x1c] sm:$0xf]
        %v255 = vld [vmem:[#allocation5 + $0x20] sm:$0xf]
        %v256 = vld [vmem:[#allocation5 + $0x24] sm:$0xf]
        %v257 = vld [vmem:[#allocation5 + $0x28] sm:$0xf]
        %v258 = vld [vmem:[#allocation5 + $0x2c] sm:$0xf]
        %v259 = vld [vmem:[#allocation5 + $0x30] sm:$0xf]
        %v260 = vld [vmem:[#allocation5 + $0x34] sm:$0xf]
        %v261 = vld [vmem:[#allocation5 + $0x38] sm:$0xf]
        %v262 = vld [vmem:[#allocation5 + $0x3c] sm:$0xf]
        %v295 = vunpack.c.l.b16 %v215
        %v296 = vunpack.c.l.b16 %v216
        %v297 = vunpack.c.l.b16 %v217
        %v298 = vunpack.c.l.b16 %v218
        %v299 = vunpack.c.l.b16 %v219
        %v300 = vunpack.c.l.b16 %v220
        %v301 = vunpack.c.l.b16 %v221
        %v302 = vunpack.c.l.b16 %v222
        %v303 = vunpack.c.l.b16 %v223
        %v304 = vunpack.c.l.b16 %v224
        %v305 = vunpack.c.l.b16 %v225
        %v306 = vunpack.c.l.b16 %v226
        %v307 = vunpack.c.l.b16 %v227
        %v308 = vunpack.c.l.b16 %v228
        %v309 = vunpack.c.l.b16 %v229
        %v310 = vunpack.c.l.b16 %v230
        %v311 = vunpack.c.l.b16 %v231
        %v312 = vunpack.c.l.b16 %v232
        %v313 = vunpack.c.l.b16 %v233
        %v314 = vunpack.c.l.b16 %v234
        %v315 = vunpack.c.l.b16 %v235
        %v316 = vunpack.c.l.b16 %v236
        %v317 = vunpack.c.l.b16 %v237
        %v318 = vunpack.c.l.b16 %v238
        %v319 = vunpack.c.l.b16 %v239
        %v320 = vunpack.c.l.b16 %v240
        %v321 = vunpack.c.l.b16 %v241
        %v322 = vunpack.c.l.b16 %v242
        %v323 = vunpack.c.l.b16 %v243
        %v324 = vunpack.c.l.b16 %v244
        %v325 = vunpack.c.l.b16 %v245
        %v326 = vunpack.c.l.b16 %v246
        %v327 = vpack.c.b16 %v296, %v295
        %v328 = vpack.c.b16 %v298, %v297
        %v329 = vpack.c.b16 %v300, %v299
        %v330 = vpack.c.b16 %v302, %v301
        %v331 = vpack.c.b16 %v304, %v303
        %v332 = vpack.c.b16 %v306, %v305
        %v333 = vpack.c.b16 %v308, %v307
        %v334 = vpack.c.b16 %v310, %v309
        %v335 = vpack.c.b16 %v312, %v311
        %v336 = vpack.c.b16 %v314, %v313
        %v337 = vpack.c.b16 %v316, %v315
        %v338 = vpack.c.b16 %v318, %v317
        %v339 = vpack.c.b16 %v320, %v319
        %v340 = vpack.c.b16 %v322, %v321
        %v341 = vpack.c.b16 %v324, %v323
        %v342 = vpack.c.b16 %v326, %v325
        %v375 = vunpack.c.l.b16 %v247
        %v376 = vunpack.c.l.b16 %v248
        %v377 = vunpack.c.l.b16 %v249
        %v378 = vunpack.c.l.b16 %v250
        %v379 = vunpack.c.l.b16 %v251
        %v380 = vunpack.c.l.b16 %v252
        %v381 = vunpack.c.l.b16 %v253
        %v382 = vunpack.c.l.b16 %v254
        %v383 = vunpack.c.l.b16 %v255
        %v384 = vunpack.c.l.b16 %v256
        %v385 = vunpack.c.l.b16 %v257
        %v386 = vunpack.c.l.b16 %v258
        %v387 = vunpack.c.l.b16 %v259
        %v388 = vunpack.c.l.b16 %v260
        %v389 = vunpack.c.l.b16 %v261
        %v390 = vunpack.c.l.b16 %v262
        %v391 = vpack.c.b16 %v376, %v375
        %v392 = vpack.c.b16 %v378, %v377
        %v393 = vpack.c.b16 %v380, %v379
        %v394 = vpack.c.b16 %v382, %v381
        %v395 = vpack.c.b16 %v384, %v383
        %v396 = vpack.c.b16 %v386, %v385
        %v397 = vpack.c.b16 %v388, %v387
        %v398 = vpack.c.b16 %v390, %v389
        %407 = vmatprep.subr.bf16.mxu0 0
        %408 = vmatpush1.bf16.msra.mxu0 %v391
        %409 = vmatprep.subr.bf16.mxu0 0
        %410 = vmatpush1.bf16.msra.mxu0 %v392
        %411 = vmatprep.subr.bf16.mxu0 0
        %412 = vmatpush1.bf16.msra.mxu0 %v393
        %413 = vmatprep.subr.bf16.mxu0 0
        %414 = vmatpush1.bf16.msra.mxu0 %v394
        %415 = vmatprep.subr.bf16.mxu0 0
        %416 = vmatpush1.bf16.msra.mxu0 %v395
        %417 = vmatprep.subr.bf16.mxu0 0
        %418 = vmatpush1.bf16.msra.mxu0 %v396
        %419 = vmatprep.subr.bf16.mxu0 0
        %420 = vmatpush1.bf16.msra.mxu0 %v397
        %421 = vmatprep.subr.bf16.mxu0 0
        %422 = vmatpush1.bf16.msra.mxu0 %v398
        %423 = vmatprep.subr.bf16.mxu0 0
        %424 = vmatpush1.bf16.msra.mxu0 0
        %425 = vmatprep.subr.bf16.mxu0 0
        %426 = vmatpush1.bf16.msra.mxu0 0
        %427 = vmatprep.subr.bf16.mxu0 0
        %428 = vmatpush1.bf16.msra.mxu0 0
        %429 = vmatprep.subr.bf16.mxu0 0
        %430 = vmatpush1.bf16.msra.mxu0 0
        %431 = vmatprep.subr.bf16.mxu0 0
        %432 = vmatpush1.bf16.msra.mxu0 0
        %433 = vmatprep.subr.bf16.mxu0 0
        %434 = vmatpush1.bf16.msra.mxu0 0
        %435 = vmatprep.subr.bf16.mxu0 0
        %436 = vmatpush1.bf16.msra.mxu0 0
        %437 = vmatprep.subr.bf16.mxu0 0
        %438 = vmatpush1.bf16.msra.mxu0 0
        %439 = vmatprep.mubr.bf16.mxu0 0
        %440 = vmatmul.mubr.bf16.gmra.mrb[0].mxu0 %v327
        %v441 = vpop.f32.mrb[0].mxu0
        %v442 = vadd.f32 0.0, %v441
        %v443 = vpop.f32.mrb[0].mxu0
        %v444 = vpop.f32.mrb[0].mxu0
        %v445 = vadd.f32 0.0, %v444
        %v446 = vpop.f32.mrb[0].mxu0
        %447 = vmatprep.mubr.bf16.mxu0 0
        %448 = vmatmul.mubr.bf16.gmra.mrb[0].mxu0 %v328
        %v449 = vpop.f32.mrb[0].mxu0
        %v450 = vadd.f32 0.0, %v449
        %v451 = vpop.f32.mrb[0].mxu0
        %v452 = vpop.f32.mrb[0].mxu0
        %v453 = vadd.f32 0.0, %v452
        %v454 = vpop.f32.mrb[0].mxu0
        %455 = vmatprep.mubr.bf16.mxu0 0
        %456 = vmatmul.mubr.bf16.gmra.mrb[0].mxu0 %v329
        %v457 = vpop.f32.mrb[0].mxu0
        %v458 = vadd.f32 0.0, %v457
        %v459 = vpop.f32.mrb[0].mxu0
        %v460 = vpop.f32.mrb[0].mxu0
        %v461 = vadd.f32 0.0, %v460
        %v462 = vpop.f32.mrb[0].mxu0
        %463 = vmatprep.mubr.bf16.mxu0 0
        %464 = vmatmul.mubr.bf16.gmra.mrb[0].mxu0 %v330
        %v465 = vpop.f32.mrb[0].mxu0
        %v466 = vadd.f32 0.0, %v465
        %v467 = vpop.f32.mrb[0].mxu0
        %v468 = vpop.f32.mrb[0].mxu0
        %v469 = vadd.f32 0.0, %v468
        %v470 = vpop.f32.mrb[0].mxu0
        %471 = vmatprep.mubr.bf16.mxu0 0
        %472 = vmatmul.mubr.bf16.gmra.mrb[0].mxu0 %v331
        %v473 = vpop.f32.mrb[0].mxu0
        %v474 = vadd.f32 0.0, %v473
        %v475 = vpop.f32.mrb[0].mxu0
        %v476 = vpop.f32.mrb[0].mxu0
        %v477 = vadd.f32 0.0, %v476
        %v478 = vpop.f32.mrb[0].mxu0
        %479 = vmatprep.mubr.bf16.mxu0 0
        %480 = vmatmul.mubr.bf16.gmra.mrb[0].mxu0 %v332
        %v481 = vpop.f32.mrb[0].mxu0
        %v482 = vadd.f32 0.0, %v481
        %v483 = vpop.f32.mrb[0].mxu0
        %v484 = vpop.f32.mrb[0].mxu0
        %v485 = vadd.f32 0.0, %v484
        %v486 = vpop.f32.mrb[0].mxu0
        %487 = vmatprep.mubr.bf16.mxu0 0
        %488 = vmatmul.mubr.bf16.gmra.mrb[0].mxu0 %v333
        %v489 = vpop.f32.mrb[0].mxu0
        %v490 = vadd.f32 0.0, %v489
        %v491 = vpop.f32.mrb[0].mxu0
        %v492 = vpop.f32.mrb[0].mxu0
        %v493 = vadd.f32 0.0, %v492
        %v494 = vpop.f32.mrb[0].mxu0
        %495 = vmatprep.mubr.bf16.mxu0 0
        %496 = vmatmul.mubr.bf16.gmra.mrb[0].mxu0 %v334
        %v497 = vpop.f32.mrb[0].mxu0
        %v498 = vadd.f32 0.0, %v497
        %v499 = vpop.f32.mrb[0].mxu0
        %v500 = vpop.f32.mrb[0].mxu0
        %v501 = vadd.f32 0.0, %v500
        %v502 = vpop.f32.mrb[0].mxu0
        %503 = vmatprep.mubr.bf16.mxu0 0
        %504 = vmatmul.mubr.bf16.gmra.mrb[0].mxu0 %v335
        %v505 = vpop.f32.mrb[0].mxu0
        %v506 = vadd.f32 0.0, %v505
        %v507 = vpop.f32.mrb[0].mxu0
        %v508 = vpop.f32.mrb[0].mxu0
        %v509 = vadd.f32 0.0, %v508
        %v510 = vpop.f32.mrb[0].mxu0
        %511 = vmatprep.mubr.bf16.mxu0 0
        %512 = vmatmul.mubr.bf16.gmra.mrb[0].mxu0 %v336
        %v513 = vpop.f32.mrb[0].mxu0
        %v514 = vadd.f32 0.0, %v513
        %v515 = vpop.f32.mrb[0].mxu0
        %v516 = vpop.f32.mrb[0].mxu0
        %v517 = vadd.f32 0.0, %v516
        %v518 = vpop.f32.mrb[0].mxu0
        %519 = vmatprep.mubr.bf16.mxu0 0
        %520 = vmatmul.mubr.bf16.gmra.mrb[0].mxu0 %v337
        %v521 = vpop.f32.mrb[0].mxu0
        %v522 = vadd.f32 0.0, %v521
        %v523 = vpop.f32.mrb[0].mxu0
        %v524 = vpop.f32.mrb[0].mxu0
        %v525 = vadd.f32 0.0, %v524
        %v526 = vpop.f32.mrb[0].mxu0
        %527 = vmatprep.mubr.bf16.mxu0 0
        %528 = vmatmul.mubr.bf16.gmra.mrb[0].mxu0 %v338
        %v529 = vpop.f32.mrb[0].mxu0
        %v530 = vadd.f32 0.0, %v529
        %v531 = vpop.f32.mrb[0].mxu0
        %v532 = vpop.f32.mrb[0].mxu0
        %v533 = vadd.f32 0.0, %v532
        %v534 = vpop.f32.mrb[0].mxu0
        %535 = vmatprep.mubr.bf16.mxu0 0
        %536 = vmatmul.mubr.bf16.gmra.mrb[0].mxu0 %v339
        %v537 = vpop.f32.mrb[0].mxu0
        %v538 = vadd.f32 0.0, %v537
        %v539 = vpop.f32.mrb[0].mxu0
        %v540 = vpop.f32.mrb[0].mxu0
        %v541 = vadd.f32 0.0, %v540
        %v542 = vpop.f32.mrb[0].mxu0
        %543 = vmatprep.mubr.bf16.mxu0 0
        %544 = vmatmul.mubr.bf16.gmra.mrb[0].mxu0 %v340
        %v545 = vpop.f32.mrb[0].mxu0
        %v546 = vadd.f32 0.0, %v545
        %v547 = vpop.f32.mrb[0].mxu0
        %v548 = vpop.f32.mrb[0].mxu0
        %v549 = vadd.f32 0.0, %v548
        %v550 = vpop.f32.mrb[0].mxu0
        %551 = vmatprep.mubr.bf16.mxu0 0
        %552 = vmatmul.mubr.bf16.gmra.mrb[0].mxu0 %v341
        %v553 = vpop.f32.mrb[0].mxu0
        %v554 = vadd.f32 0.0, %v553
        %v555 = vpop.f32.mrb[0].mxu0
        %v556 = vpop.f32.mrb[0].mxu0
        %v557 = vadd.f32 0.0, %v556
        %v558 = vpop.f32.mrb[0].mxu0
        %559 = vmatprep.mubr.bf16.mxu0 0
        %560 = vmatmul.mubr.bf16.gmra.mrb[0].mxu0 %v342
        %v561 = vpop.f32.mrb[0].mxu0
        %v562 = vadd.f32 0.0, %v561
        %v563 = vpop.f32.mrb[0].mxu0
        %v564 = vpop.f32.mrb[0].mxu0
        %v565 = vadd.f32 0.0, %v564
        %v566 = vpop.f32.mrb[0].mxu0
        %567 = vdwg.mxu0
        %v568 = vadd.f32 %v442, %v445
        %v569 = vadd.f32 %v568, %v450
        %v570 = vadd.f32 %v569, %v453
        %v571 = vadd.f32 %v570, %v458
        %v572 = vadd.f32 %v571, %v461
        %v573 = vadd.f32 %v572, %v466
        %v574 = vadd.f32 %v573, %v469
        %v575 = vadd.f32 %v574, %v474
        %v576 = vadd.f32 %v575, %v477
        %v577 = vadd.f32 %v576, %v482
        %v578 = vadd.f32 %v577, %v485
        %v579 = vadd.f32 %v578, %v490
        %v580 = vadd.f32 %v579, %v493
        %v581 = vadd.f32 %v580, %v498
        %v582 = vadd.f32 %v581, %v501
        %v583 = vadd.f32 %v582, %v506
        %v584 = vadd.f32 %v583, %v509
        %v585 = vadd.f32 %v584, %v514
        %v586 = vadd.f32 %v585, %v517
        %v587 = vadd.f32 %v586, %v522
        %v588 = vadd.f32 %v587, %v525
        %v589 = vadd.f32 %v588, %v530
        %v590 = vadd.f32 %v589, %v533
        %v591 = vadd.f32 %v590, %v538
        %v592 = vadd.f32 %v591, %v541
        %v593 = vadd.f32 %v592, %v546
        %v594 = vadd.f32 %v593, %v549
        %v595 = vadd.f32 %v594, %v554
        %v596 = vadd.f32 %v595, %v557
        %v597 = vadd.f32 %v596, %v562
        %v598 = vadd.f32 %v597, %v565
        %v599 = vrot.slane %v598, 4
        %v600 = vadd.f32 %v598, %v599
        %v601 = vrot.slane %v600, 2
        %v602 = vadd.f32 %v600, %v601
        %v603 = vrot.slane %v602, 1
        %v604 = vadd.f32 %v602, %v603
        %605 = vst [vmem:[%s206] sm:$0x1] %v604
        %v606 = vmul.f32 %v442, %v442
        %v607 = vmul.f32 %v445, %v445
        %v608 = vmul.f32 %v450, %v450
        %v609 = vmul.f32 %v453, %v453
        %v610 = vmul.f32 %v458, %v458
        %v611 = vmul.f32 %v461, %v461
        %v612 = vmul.f32 %v466, %v466
        %v613 = vmul.f32 %v469, %v469
        %v614 = vmul.f32 %v474, %v474
        %v615 = vmul.f32 %v477, %v477
        %v616 = vmul.f32 %v482, %v482
        %v617 = vmul.f32 %v485, %v485
        %v618 = vmul.f32 %v490, %v490
        %v619 = vmul.f32 %v493, %v493
        %v620 = vmul.f32 %v498, %v498
        %v621 = vmul.f32 %v501, %v501
        %v622 = vmul.f32 %v506, %v506
        %v623 = vmul.f32 %v509, %v509
        %v624 = vmul.f32 %v514, %v514
        %v625 = vmul.f32 %v517, %v517
        %v626 = vmul.f32 %v522, %v522
        %v627 = vmul.f32 %v525, %v525
        %v628 = vmul.f32 %v530, %v530
        %v629 = vmul.f32 %v533, %v533
        %v630 = vmul.f32 %v538, %v538
        %v631 = vmul.f32 %v541, %v541
        %v632 = vmul.f32 %v546, %v546
        %v633 = vmul.f32 %v549, %v549
        %v634 = vmul.f32 %v554, %v554
        %v635 = vmul.f32 %v557, %v557
        %v636 = vmul.f32 %v562, %v562
        %v637 = vmul.f32 %v565, %v565
        %v638 = vadd.f32 %v606, %v607
        %v639 = vadd.f32 %v638, %v608
        %v640 = vadd.f32 %v639, %v609
        %v641 = vadd.f32 %v640, %v610
        %v642 = vadd.f32 %v641, %v611
        %v643 = vadd.f32 %v642, %v612
        %v644 = vadd.f32 %v643, %v613
        %v645 = vadd.f32 %v644, %v614
        %v646 = vadd.f32 %v645, %v615
        %v647 = vadd.f32 %v646, %v616
        %v648 = vadd.f32 %v647, %v617
        %v649 = vadd.f32 %v648, %v618
        %v650 = vadd.f32 %v649, %v619
        %v651 = vadd.f32 %v650, %v620
        %v652 = vadd.f32 %v651, %v621
        %v653 = vadd.f32 %v652, %v622
        %v654 = vadd.f32 %v653, %v623
        %v655 = vadd.f32 %v654, %v624
        %v656 = vadd.f32 %v655, %v625
        %v657 = vadd.f32 %v656, %v626
        %v658 = vadd.f32 %v657, %v627
        %v659 = vadd.f32 %v658, %v628
        %v660 = vadd.f32 %v659, %v629
        %v661 = vadd.f32 %v660, %v630
        %v662 = vadd.f32 %v661, %v631
        %v663 = vadd.f32 %v662, %v632
        %v664 = vadd.f32 %v663, %v633
        %v665 = vadd.f32 %v664, %v634
        %v666 = vadd.f32 %v665, %v635
        %v667 = vadd.f32 %v666, %v636
        %v668 = vadd.f32 %v667, %v637
        %v669 = vrot.slane %v668, 4
        %v670 = vadd.f32 %v668, %v669
        %v671 = vrot.slane %v670, 2
        %v672 = vadd.f32 %v670, %v671
        %v673 = vrot.slane %v672, 1
        %v674 = vadd.f32 %v672, %v673
        %675 = vst [vmem:[%s212] sm:$0x1] %v674
        %s676 = sand.u32 %s80, 1
        %s677 = scalar_lea.sflag [#allocation4], %s676
        %s678 = sand.u32 %s80, 1
        %s679 = scalar_lea.vmem [#allocation7], %s678
        %s680 = sand.u32 %s106, 1
        %s681 = scalar_lea.sflag [#allocation9], %s680
        %s682 = sand.u32 %s106, 1
        %s683 = scalar_lea.vmem [#allocation8], %s682
        // Predicated region
        $region37: #{tpu_custom_call.1} parent=27 // pred_check
          %p684 = pneg %p90
        $region38: #{tpu_custom_call.1} parent=27 // pred_check_branch
          %686 = sbr.rel (%p684) target = $region40
        $region39: #{tpu_custom_call.1} parent=27 // pred_region
          %s688 = ssub.s32 16, 16
          %689 = vsyncadd %s677, %s688
          %s690 = smul.addr %s25, 16
          %s691 = scalar_lea.hbm %s2, %s690
          %s693 = sshll.u32 %s679, 4
          %s694 = int_to_ptr.vmem [resolvable:$true] %s693
          %696 = dma.vmem_to_hbm [thread:$0]  %s694, 16, %s691, %s677
        $region40: #{tpu_custom_call.1} parent=27 // pred_fallthru
          _
        // Predicated region
        $region41: #{tpu_custom_call.1} parent=27 // pred_check
          %p697 = pneg %p116
        $region42: #{tpu_custom_call.1} parent=27 // pred_check_branch
          %699 = sbr.rel (%p697) target = $region44
        $region43: #{tpu_custom_call.1} parent=27 // pred_region
          %s701 = ssub.s32 16, 16
          %702 = vsyncadd %s681, %s701
          %s703 = smul.addr %s25, 16
          %s704 = scalar_lea.hbm %s3, %s703
          %s706 = sshll.u32 %s683, 4
          %s707 = int_to_ptr.vmem [resolvable:$true] %s706
          %709 = dma.vmem_to_hbm [thread:$0]  %s707, 16, %s704, %s681
        $region44: #{tpu_custom_call.1} parent=27 // pred_fallthru
          _
      $region28: #{tpu_custom_call.1} parent=5 // pred_fallthru
        _
      %p710 = scmp.le.s32.totalorder 2, %s20
      // Predicated region
      $region45: #{tpu_custom_call.1} parent=5 // pred_check
        %p711 = pneg %p710
      $region46: #{tpu_custom_call.1} parent=5 // pred_check_branch
        %713 = sbr.rel (%p711) target = $region48
      $region47: #{tpu_custom_call.1} parent=5 // pred_region
        %s714 = ssub.s32 %s20, 2
        // Predicated region
        $region49: #{tpu_custom_call.1} parent=47 // pred_check
          %p715 = pneg %p96
        $region50: #{tpu_custom_call.1} parent=47 // pred_check_branch
          %717 = sbr.rel (%p715) target = $region52
        $region51: #{tpu_custom_call.1} parent=47 // pred_region
          %s718 = sand.u32 %s81, 1
          %s719 = scalar_lea.sflag [#allocation4], %s718
          %s720 = sand.u32 %s81, 1
          %s721 = scalar_lea.vmem [#allocation7], %s720
          %722 = dma.done %s719, 16
        $region52: #{tpu_custom_call.1} parent=47 // pred_fallthru
          _
        // Predicated region
        $region53: #{tpu_custom_call.1} parent=47 // pred_check
          %p723 = pneg %p122
        $region54: #{tpu_custom_call.1} parent=47 // pred_check_branch
          %725 = sbr.rel (%p723) target = $region56
        $region55: #{tpu_custom_call.1} parent=47 // pred_region
          %s726 = sand.u32 %s107, 1
          %s727 = scalar_lea.sflag [#allocation9], %s726
          %s728 = sand.u32 %s107, 1
          %s729 = scalar_lea.vmem [#allocation8], %s728
          %730 = dma.done %s727, 16
        $region56: #{tpu_custom_call.1} parent=47 // pred_fallthru
          _
      $region48: #{tpu_custom_call.1} parent=5 // pred_fallthru
        _
    $region6: #{tpu_custom_call.1} parent=1 // loop_footer
      %s24 = sadd.s32 1, %s20
    $region7: #{tpu_custom_call.1} parent=1 // loop_footer_branch
      %19 = sbr.rel target = $region3
    $region8: #{tpu_custom_call.1} parent=1 // loop_exit
      _
    %731 = vsyncpa [#allocation3], 1
    %s732 = scalar_lea.sflag [#allocation3], 1
    %733 = vsyncpa %s732, 1
    %734 = vsyncpa [#allocation6], 1
    %735 = vsyncpa [#allocation4], 1
    %s736 = scalar_lea.sflag [#allocation4], 1
    %737 = vsyncpa %s736, 1
    %738 = vsyncpa [#allocation9], 1
    %s739 = scalar_lea.sflag [#allocation9], 1
    %740 = vsyncpa %s739, 1

</llo_original>
